<compile_context>
chip_gen: v6e
topology: v6e:2x2x1
jax: 0.10.0
libtpu: 0.0.40
codegen_flags: <defaults>
</compile_context>

<pallas_src>
import functools
import math

import jax
import jax.numpy as jnp
from jax import lax
from jax.experimental import pallas as pl
from jax.experimental.pallas import tpu as pltpu


def _round_up(x, m):
    return ((x + m - 1) // m) * m


def _cdiv(a, b):
    return -(-a // b)


def _tensorcores_per_chip():
    # Only v7x has 2 TensorCores per chip; gate the grid-split heuristic on it.
    try:
        kind = jax.devices()[0].device_kind.lower()
        if "v7" in kind:
            return 2
    except Exception:
        pass
    return 1


# ---------------------------------------------------------------------------
# Fused kernel: init Linear+ReLU, L hidden Linear+ReLU, final Linear.
# All operands live in VMEM. Matmul operands may be bf16; accumulation is f32,
# bias-add + ReLU epilogue is f32.
# ---------------------------------------------------------------------------
def _fused_mlp_kernel(x_ref, wi_ref, bi_ref, wh_ref, bh_ref, wf_ref, bf_ref,
                      o_ref, *, num_layers):
    # init Linear + ReLU (weights stored pre-transposed as [in, out]).
    h = jnp.dot(x_ref[...], wi_ref[...], preferred_element_type=jnp.float32)
    h = jnp.maximum(h + bi_ref[...].astype(jnp.float32), 0.0)

    # Hidden Linear + ReLU layers. Weights stacked [L, F, F], biases [L, 1, F].
    def layer(l, h):
        hl = jnp.dot(h.astype(wh_ref.dtype), wh_ref[l],
                     preferred_element_type=jnp.float32)
        return jnp.maximum(hl + bh_ref[l].astype(jnp.float32), 0.0)

    if num_layers <= 4:
        for l in range(num_layers):          # static unroll for tiny L
            h = layer(l, h)
    else:
        h = lax.fori_loop(0, num_layers, layer, h)   # bounded live ranges at big L

    # Final Linear (no activation); lane-dense (128-multiple wide) store.
    y = jnp.dot(h.astype(wf_ref.dtype), wf_ref[...],
                preferred_element_type=jnp.float32)
    o_ref[...] = (y + bf_ref[...].astype(jnp.float32)).astype(o_ref.dtype)


# ---------------------------------------------------------------------------
# Parameter init (weights generated directly in [in, out] layout -> no runtime .T).
# ---------------------------------------------------------------------------
def xavier_uniform_t(key, fan_in, fan_out):
    # torch.nn.init.xavier_uniform_ is symmetric in (fan_in, fan_out).
    limit = math.sqrt(6.0 / (fan_in + fan_out))
    return jax.random.uniform(key, (fan_in, fan_out), jnp.float32, -limit, limit)


def linear_default_bias(key, fan_in, fan_out):
    # torch nn.Linear default bias init: U(-1/sqrt(fan_in), 1/sqrt(fan_in)).
    bound = 1.0 / math.sqrt(fan_in)
    return jax.random.uniform(key, (fan_out,), jnp.float32, -bound, bound)


def init_params(key, d_in, num_features, num_layers):
    params = {}
    k = key
    k, k1, k2 = jax.random.split(k, 3)
    params["init_w"] = xavier_uniform_t(k1, d_in, num_features)       # (D_in, F)
    params["init_b"] = linear_default_bias(k2, d_in, num_features)    # (F,)
    params["hidden"] = []
    for _ in range(num_layers):
        k, k1, k2 = jax.random.split(k, 3)
        w = xavier_uniform_t(k1, num_features, num_features)          # (F, F)
        b = linear_default_bias(k2, num_features, num_features)       # (F,)
        params["hidden"].append((w, b))
    k, k1, k2 = jax.random.split(k, 3)
    params["final_w"] = xavier_uniform_t(k1, num_features, d_in)      # (F, D_in)
    params["final_b"] = linear_default_bias(k2, num_features, d_in)   # (D_in,)
    return params


# ---------------------------------------------------------------------------
# One-time padding / stacking of parameters (outside the hot path).
# Padded entries are ZERO so they contribute nothing; output is sliced later.
# The first-layer K dim (D_in) is intentionally NOT padded.
# ---------------------------------------------------------------------------
def build_padded_params(params, d_in, num_features, num_layers,
                        *, compute_dtype=jnp.bfloat16):
    d_pad = _round_up(d_in, 128)          # output lane width (lane-dense stores)
    f_pad = _round_up(num_features, 128)

    def pad2(w, r, c):
        return jnp.zeros((r, c), compute_dtype).at[:w.shape[0], :w.shape[1]].set(
            w.astype(compute_dtype))

    def pad_bias(b, n):
        return jnp.zeros((1, n), jnp.float32).at[0, :b.shape[0]].set(b)

    wi = pad2(params["init_w"], d_in, f_pad)          # (D_in, F_pad)  -- K unpadded
    bi = pad_bias(params["init_b"], f_pad)            # (1, F_pad)

    l_stack = max(num_layers, 1)                      # keep a dummy slab for L == 0
    wh = jnp.zeros((l_stack, f_pad, f_pad), compute_dtype)
    bh = jnp.zeros((l_stack, 1, f_pad), jnp.float32)
    for l, (w, b) in enumerate(params["hidden"]):
        wh = wh.at[l, :w.shape[0], :w.shape[1]].set(w.astype(compute_dtype))
        bh = bh.at[l, 0, :b.shape[0]].set(b)

    wf = pad2(params["final_w"], f_pad, d_pad)        # (F_pad, D_pad)
    bf = pad_bias(params["final_b"], d_pad)           # (1, D_pad)

    return {"wi": wi, "bi": bi, "wh": wh, "bh": bh, "wf": wf, "bf": bf}


# ---------------------------------------------------------------------------
# Forward wrapper: (maybe) pad batch, run the fused kernel, slice the result.
# ---------------------------------------------------------------------------
def mlp_forward(padded, x, *, d_in, num_layers, batch_tile=None,
                single_buffer_weights=True):
    b, din = x.shape
    compute_dtype = jnp.dtype(padded["wi"].dtype)
    k_in = padded["wi"].shape[0]
    f_pad = padded["wi"].shape[1]
    d_pad = padded["wf"].shape[1]
    l_stack = padded["wh"].shape[0]
    assert din == k_in == d_in

    # Batch tile: multiple of 16 for bf16 (sublane packing) / 8 for f32;
    # cap 512 rows (big tiles amortize the ~0.35 us per-grid-step overhead).
    mult = 16 if compute_dtype == jnp.dtype(jnp.bfloat16) else 8
    if batch_tile is None:
        tb = min(512, _round_up(b, mult))
        nc = _tensorcores_per_chip()
        if nc > 1 and b >= 2 * mult:
            # v7x: give the "parallel" batch axis at least `nc` programs.
            tb = min(tb, _round_up(_cdiv(_round_up(b, mult), nc), mult))
    else:
        tb = batch_tile
    b_pad = _round_up(b, tb)

    # Skip the wrapper pad pass (a full HBM read+write) when shapes conform.
    if b_pad == b:
        x_p = x.astype(compute_dtype)
    else:
        x_p = jnp.zeros((b_pad, din), compute_dtype).at[:b, :].set(
            x.astype(compute_dtype))

    # Parameters are grid-invariant -> single-buffer their VMEM copies.
    def wspec(shape, index_map):
        if single_buffer_weights:
            return pl.BlockSpec(shape, index_map, pipeline_mode=pl.Buffered(1))
        return pl.BlockSpec(shape, index_map)

    # Explicit scoped-VMEM budget: params (single-buffered) + double-buffered
    # x/out tiles + f32 activation temporaries, x2 headroom, clamped 32..64 MiB.
    itemsize = compute_dtype.itemsize
    wfac = 1 if single_buffer_weights else 2
    param_bytes = wfac * (
        (padded["wi"].size + padded["wh"].size + padded["wf"].size) * itemsize
        + (padded["bi"].size + padded["bh"].size + padded["bf"].size) * 4)
    io_bytes = 2 * tb * din * itemsize + 2 * tb * d_pad * 4
    act_bytes = 4 * tb * max(f_pad, d_pad) * 4
    vmem_limit = int(min(max(2 * (param_bytes + io_bytes + act_bytes), 32 << 20),
                         64 << 20))

    kernel = functools.partial(_fused_mlp_kernel, num_layers=num_layers)

    out = pl.pallas_call(
        kernel,
        out_shape=jax.ShapeDtypeStruct((b_pad, d_pad), jnp.float32),
        grid_spec=pltpu.PrefetchScalarGridSpec(
            num_scalar_prefetch=0,
            grid=(b_pad // tb,),
            in_specs=[
                pl.BlockSpec((tb, din), lambda i: (i, 0)),              # x tile
                wspec((k_in, f_pad), lambda i: (0, 0)),                 # W_init
                wspec((1, f_pad), lambda i: (0, 0)),                    # b_init
                wspec((l_stack, f_pad, f_pad), lambda i: (0, 0, 0)),    # W_hidden
                wspec((l_stack, 1, f_pad), lambda i: (0, 0, 0)),        # b_hidden
                wspec((f_pad, d_pad), lambda i: (0, 0)),                # W_final
                wspec((1, d_pad), lambda i: (0, 0)),                    # b_final
            ],
            out_specs=pl.BlockSpec((tb, d_pad), lambda i: (i, 0)),
        ),
        compiler_params=pltpu.CompilerParams(
            dimension_semantics=("parallel",),    # megacore sharding on v7x
            vmem_limit_bytes=vmem_limit,
        ),
    )(x_p, padded["wi"], padded["bi"], padded["wh"], padded["bh"],
      padded["wf"], padded["bf"])

    # Output stays lane-dense (d_pad wide) inside the kernel; slice back to the
    # module's logical shape here. Only slice the batch dim if it was padded.
    return out[:, :d_in] if b_pad == b else out[:b, :d_in]


if __name__ == "__main__":
    # Small config consistent with the module:
    #   num_nodes=4, num_modes=2 -> D_in = 4*4*2 = 32
    #   num_features=32, num_layers=2, batch=8
    num_nodes, num_modes = 4, 2
    num_features, num_layers = 32, 2
    d_in = num_nodes * num_nodes * num_modes
    batch = 8

    key = jax.random.PRNGKey(0)
    key, xk = jax.random.split(key)
    x = jax.random.normal(xk, (batch, d_in), jnp.float32)

    params = init_params(key, d_in, num_features, num_layers)
    compute_dtype = jnp.bfloat16          # bf16 operands, f32 accumulation
    padded = build_padded_params(params, d_in, num_features, num_layers,
                                 compute_dtype=compute_dtype)

    fwd = jax.jit(functools.partial(mlp_forward, d_in=d_in,
                                    num_layers=num_layers))
    try:
        out = jax.block_until_ready(fwd(padded, x))
    except Exception:
        # Fallback if this jax build rejects pipeline_mode=pl.Buffered(1):
        # default (double-buffered) weight specs -- functionally identical.
        fwd = jax.jit(functools.partial(mlp_forward, d_in=d_in,
                                        num_layers=num_layers,
                                        single_buffer_weights=False))
        out = jax.block_until_ready(fwd(padded, x))

    # Reference with the SAME math (bf16 matmul operands, f32 accumulation,
    # f32 bias + ReLU) so the tolerance stays tight while matching the module.
    def ref_forward(xv):
        cd = compute_dtype
        h = jnp.dot(xv.astype(cd), params["init_w"].astype(cd),
                    preferred_element_type=jnp.float32)
        h = jnp.maximum(h + params["init_b"], 0.0)
        for w, b_ in params["hidden"]:
            h = jnp.dot(h.astype(cd), w.astype(cd),
                        preferred_element_type=jnp.float32)
            h = jnp.maximum(h + b_, 0.0)
        y = jnp.dot(h.astype(cd), params["final_w"].astype(cd),
                    preferred_element_type=jnp.float32)
        return y + params["final_b"]

    ref = ref_forward(x)
    assert out.shape == (batch, d_in)
    max_err = float(jnp.max(jnp.abs(out - ref)))
    assert jnp.allclose(out, ref, atol=2e-2, rtol=2e-2), max_err

    print("KERNEL_OK")
</pallas_src>

<mosaic_0001>
module attributes {stable_mosaic.version = 11 : i64} {
  func.func @_fused_mlp_kernel(%arg0: i32, %arg1: memref<16x32xbf16, #tpu.memory_space<vmem>>, %arg2: memref<32x128xbf16, #tpu.memory_space<vmem>>, %arg3: memref<1x128xf32, #tpu.memory_space<vmem>>, %arg4: memref<2x128x128xbf16, #tpu.memory_space<vmem>>, %arg5: memref<2x1x128xf32, #tpu.memory_space<vmem>>, %arg6: memref<128x128xbf16, #tpu.memory_space<vmem>>, %arg7: memref<1x128xf32, #tpu.memory_space<vmem>>, %arg8: memref<16x128xf32, #tpu.memory_space<vmem>>) attributes {dimension_semantics = [#tpu.dimension_semantics<parallel>], iteration_bounds = array<i64: 1>, scalar_prefetch = 0 : i64, scratch_operands = 0 : i64, tpu.core_type = #tpu.core_type<tc>, window_params = [{transform_indices = @transform_0, window_bounds = array<i64: 16, 32>}, {pipeline_mode = #tpu.pipeline_mode<synchronous>, transform_indices = @transform_1, window_bounds = array<i64: 32, 128>}, {pipeline_mode = #tpu.pipeline_mode<synchronous>, transform_indices = @transform_2, window_bounds = array<i64: 1, 128>}, {pipeline_mode = #tpu.pipeline_mode<synchronous>, transform_indices = @transform_3, window_bounds = array<i64: 2, 128, 128>}, {pipeline_mode = #tpu.pipeline_mode<synchronous>, transform_indices = @transform_4, window_bounds = array<i64: 2, 1, 128>}, {pipeline_mode = #tpu.pipeline_mode<synchronous>, transform_indices = @transform_5, window_bounds = array<i64: 128, 128>}, {pipeline_mode = #tpu.pipeline_mode<synchronous>, transform_indices = @transform_6, window_bounds = array<i64: 1, 128>}, {transform_indices = @transform_7, window_bounds = array<i64: 16, 128>}]} {
    %c0 = arith.constant 0 : index
    %c0_0 = arith.constant 0 : index
    %0 = vector.load %arg1[%c0, %c0_0] : memref<16x32xbf16, #tpu.memory_space<vmem>>, vector<16x32xbf16>
    %c0_1 = arith.constant 0 : index
    %c0_2 = arith.constant 0 : index
    %1 = vector.load %arg2[%c0_1, %c0_2] : memref<32x128xbf16, #tpu.memory_space<vmem>>, vector<32x128xbf16>
    %cst = arith.constant dense<0.000000e+00> : vector<16x128xf32>
    %2 = tpu.matmul %0, %1, %cst {dimension_numbers = #tpu.dot_dimension_numbers<[1], [0], [0], [1], [0, 0, 1, 1], [], []>} : vector<16x32xbf16>, vector<32x128xbf16>, vector<16x128xf32> -> vector<16x128xf32>
    %c0_3 = arith.constant 0 : index
    %c0_4 = arith.constant 0 : index
    %3 = vector.load %arg3[%c0_3, %c0_4] : memref<1x128xf32, #tpu.memory_space<vmem>>, vector<1x128xf32>
    %4 = vector.broadcast %3 : vector<1x128xf32> to vector<16x128xf32>
    %5 = arith.addf %2, %4 : vector<16x128xf32>
    %cst_5 = arith.constant 0.000000e+00 : f32
    %6 = vector.broadcast %cst_5 : f32 to vector<16x128xf32>
    %7 = arith.maximumf %5, %6 : vector<16x128xf32>
    %8 = arith.truncf %7 : vector<16x128xf32> to vector<16x128xbf16>
    %c0_6 = arith.constant 0 : index
    %c0_7 = arith.constant 0 : index
    %c0_8 = arith.constant 0 : index
    %9 = vector.load %arg4[%c0_6, %c0_7, %c0_8] : memref<2x128x128xbf16, #tpu.memory_space<vmem>>, vector<1x128x128xbf16>
    %10 = vector.shape_cast %9 : vector<1x128x128xbf16> to vector<128x128xbf16>
    %cst_9 = arith.constant dense<0.000000e+00> : vector<16x128xf32>
    %11 = tpu.matmul %8, %10, %cst_9 {dimension_numbers = #tpu.dot_dimension_numbers<[1], [0], [0], [1], [0, 0, 1, 1], [], []>} : vector<16x128xbf16>, vector<128x128xbf16>, vector<16x128xf32> -> vector<16x128xf32>
    %c0_10 = arith.constant 0 : index
    %c0_11 = arith.constant 0 : index
    %c0_12 = arith.constant 0 : index
    %12 = vector.load %arg5[%c0_10, %c0_11, %c0_12] : memref<2x1x128xf32, #tpu.memory_space<vmem>>, vector<1x1x128xf32>
    %13 = vector.shape_cast %12 : vector<1x1x128xf32> to vector<1x128xf32>
    %14 = vector.broadcast %13 : vector<1x128xf32> to vector<16x128xf32>
    %15 = arith.addf %11, %14 : vector<16x128xf32>
    %cst_13 = arith.constant 0.000000e+00 : f32
    %16 = vector.broadcast %cst_13 : f32 to vector<16x128xf32>
    %17 = arith.maximumf %15, %16 : vector<16x128xf32>
    %18 = arith.truncf %17 : vector<16x128xf32> to vector<16x128xbf16>
    %c1 = arith.constant 1 : index
    %c0_14 = arith.constant 0 : index
    %c0_15 = arith.constant 0 : index
    %19 = vector.load %arg4[%c1, %c0_14, %c0_15] : memref<2x128x128xbf16, #tpu.memory_space<vmem>>, vector<1x128x128xbf16>
    %20 = vector.shape_cast %19 : vector<1x128x128xbf16> to vector<128x128xbf16>
    %cst_16 = arith.constant dense<0.000000e+00> : vector<16x128xf32>
    %21 = tpu.matmul %18, %20, %cst_16 {dimension_numbers = #tpu.dot_dimension_numbers<[1], [0], [0], [1], [0, 0, 1, 1], [], []>} : vector<16x128xbf16>, vector<128x128xbf16>, vector<16x128xf32> -> vector<16x128xf32>
    %c1_17 = arith.constant 1 : index
    %c0_18 = arith.constant 0 : index
    %c0_19 = arith.constant 0 : index
    %22 = vector.load %arg5[%c1_17, %c0_18, %c0_19] : memref<2x1x128xf32, #tpu.memory_space<vmem>>, vector<1x1x128xf32>
    %23 = vector.shape_cast %22 : vector<1x1x128xf32> to vector<1x128xf32>
    %24 = vector.broadcast %23 : vector<1x128xf32> to vector<16x128xf32>
    %25 = arith.addf %21, %24 : vector<16x128xf32>
    %cst_20 = arith.constant 0.000000e+00 : f32
    %26 = vector.broadcast %cst_20 : f32 to vector<16x128xf32>
    %27 = arith.maximumf %25, %26 : vector<16x128xf32>
    %28 = arith.truncf %27 : vector<16x128xf32> to vector<16x128xbf16>
    %c0_21 = arith.constant 0 : index
    %c0_22 = arith.constant 0 : index
    %29 = vector.load %arg6[%c0_21, %c0_22] : memref<128x128xbf16, #tpu.memory_space<vmem>>, vector<128x128xbf16>
    %cst_23 = arith.constant dense<0.000000e+00> : vector<16x128xf32>
    %30 = tpu.matmul %28, %29, %cst_23 {dimension_numbers = #tpu.dot_dimension_numbers<[1], [0], [0], [1], [0, 0, 1, 1], [], []>} : vector<16x128xbf16>, vector<128x128xbf16>, vector<16x128xf32> -> vector<16x128xf32>
    %c0_24 = arith.constant 0 : index
    %c0_25 = arith.constant 0 : index
    %31 = vector.load %arg7[%c0_24, %c0_25] : memref<1x128xf32, #tpu.memory_space<vmem>>, vector<1x128xf32>
    %32 = vector.broadcast %31 : vector<1x128xf32> to vector<16x128xf32>
    %33 = arith.addf %30, %32 : vector<16x128xf32>
    %c0_26 = arith.constant 0 : index
    %c0_27 = arith.constant 0 : index
    %34 = vector.load %arg8[%c0_26, %c0_27] : memref<16x128xf32, #tpu.memory_space<vmem>>, vector<16x128xf32>
    tpu.vector_store %arg8[%c0_26, %c0_27], %33 {strides = array<i32>} : memref<16x128xf32, #tpu.memory_space<vmem>>, vector<16x128xf32>,
    return
  }
  func.func @transform_0(%arg0: i32) -> (i32, i32) {
    %c0_i32 = arith.constant 0 : i32
    %c0_i32_0 = arith.constant 0 : i32
    return %arg0, %c0_i32 : i32, i32
  }
  func.func @transform_1(%arg0: i32) -> (i32, i32) {
    %c0_i32 = arith.constant 0 : i32
    %c0_i32_0 = arith.constant 0 : i32
    %c0_i32_1 = arith.constant 0 : i32
    return %c0_i32, %c0_i32_0 : i32, i32
  }
  func.func @transform_2(%arg0: i32) -> (i32, i32) {
    %c0_i32 = arith.constant 0 : i32
    %c0_i32_0 = arith.constant 0 : i32
    %c0_i32_1 = arith.constant 0 : i32
    return %c0_i32, %c0_i32_0 : i32, i32
  }
  func.func @transform_3(%arg0: i32) -> (i32, i32, i32) {
    %c0_i32 = arith.constant 0 : i32
    %c0_i32_0 = arith.constant 0 : i32
    %c0_i32_1 = arith.constant 0 : i32
    %c0_i32_2 = arith.constant 0 : i32
    return %c0_i32, %c0_i32_0, %c0_i32_1 : i32, i32, i32
  }
  func.func @transform_4(%arg0: i32) -> (i32, i32, i32) {
    %c0_i32 = arith.constant 0 : i32
    %c0_i32_0 = arith.constant 0 : i32
    %c0_i32_1 = arith.constant 0 : i32
    %c0_i32_2 = arith.constant 0 : i32
    return %c0_i32, %c0_i32_0, %c0_i32_1 : i32, i32, i32
  }
  func.func @transform_5(%arg0: i32) -> (i32, i32) {
    %c0_i32 = arith.constant 0 : i32
    %c0_i32_0 = arith.constant 0 : i32
    %c0_i32_1 = arith.constant 0 : i32
    return %c0_i32, %c0_i32_0 : i32, i32
  }
  func.func @transform_6(%arg0: i32) -> (i32, i32) {
    %c0_i32 = arith.constant 0 : i32
    %c0_i32_0 = arith.constant 0 : i32
    %c0_i32_1 = arith.constant 0 : i32
    return %c0_i32, %c0_i32_0 : i32, i32
  }
  func.func @transform_7(%arg0: i32) -> (i32, i32) {
    %c0_i32 = arith.constant 0 : i32
    %c0_i32_0 = arith.constant 0 : i32
    return %arg0, %c0_i32 : i32, i32
  }
}

module attributes {stable_mosaic.version = 11 : i64} {
  func.func @_fused_mlp_kernel(%arg0: i32, %arg1: memref<16x32xbf16, #tpu.memory_space<vmem>>, %arg2: memref<32x128xbf16, #tpu.memory_space<vmem>>, %arg3: memref<1x128xf32, #tpu.memory_space<vmem>>, %arg4: memref<2x128x128xbf16, #tpu.memory_space<vmem>>, %arg5: memref<2x1x128xf32, #tpu.memory_space<vmem>>, %arg6: memref<128x128xbf16, #tpu.memory_space<vmem>>, %arg7: memref<1x128xf32, #tpu.memory_space<vmem>>, %arg8: memref<16x128xf32, #tpu.memory_space<vmem>>) attributes {dimension_semantics = [#tpu.dimension_semantics<parallel>], iteration_bounds = array<i64: 1>, scalar_prefetch = 0 : i64, scratch_operands = 0 : i64, tpu.core_type = #tpu.core_type<tc>, window_params = [{transform_indices = @transform_0, window_bounds = array<i64: 16, 32>}, {pipeline_mode = #tpu.pipeline_mode<synchronous>, transform_indices = @transform_1, window_bounds = array<i64: 32, 128>}, {pipeline_mode = #tpu.pipeline_mode<synchronous>, transform_indices = @transform_2, window_bounds = array<i64: 1, 128>}, {pipeline_mode = #tpu.pipeline_mode<synchronous>, transform_indices = @transform_3, window_bounds = array<i64: 2, 128, 128>}, {pipeline_mode = #tpu.pipeline_mode<synchronous>, transform_indices = @transform_4, window_bounds = array<i64: 2, 1, 128>}, {pipeline_mode = #tpu.pipeline_mode<synchronous>, transform_indices = @transform_5, window_bounds = array<i64: 128, 128>}, {pipeline_mode = #tpu.pipeline_mode<synchronous>, transform_indices = @transform_6, window_bounds = array<i64: 1, 128>}, {transform_indices = @transform_7, window_bounds = array<i64: 16, 128>}]} {
    %c0 = arith.constant 0 : index
    %c0_0 = arith.constant 0 : index
    %0 = vector.load %arg1[%c0, %c0_0] : memref<16x32xbf16, #tpu.memory_space<vmem>>, vector<16x32xbf16>
    %c0_1 = arith.constant 0 : index
    %c0_2 = arith.constant 0 : index
    %1 = vector.load %arg2[%c0_1, %c0_2] : memref<32x128xbf16, #tpu.memory_space<vmem>>, vector<32x128xbf16>
    %cst = arith.constant dense<0.000000e+00> : vector<16x128xf32>
    %2 = tpu.matmul %0, %1, %cst {dimension_numbers = #tpu.dot_dimension_numbers<[1], [0], [0], [1], [0, 0, 1, 1], [], []>} : vector<16x32xbf16>, vector<32x128xbf16>, vector<16x128xf32> -> vector<16x128xf32>
    %c0_3 = arith.constant 0 : index
    %c0_4 = arith.constant 0 : index
    %3 = vector.load %arg3[%c0_3, %c0_4] : memref<1x128xf32, #tpu.memory_space<vmem>>, vector<1x128xf32>
    %4 = vector.broadcast %3 : vector<1x128xf32> to vector<16x128xf32>
    %5 = arith.addf %2, %4 : vector<16x128xf32>
    %cst_5 = arith.constant 0.000000e+00 : f32
    %6 = vector.broadcast %cst_5 : f32 to vector<16x128xf32>
    %7 = arith.maximumf %5, %6 : vector<16x128xf32>
    %8 = arith.truncf %7 : vector<16x128xf32> to vector<16x128xbf16>
    %c0_6 = arith.constant 0 : index
    %c0_7 = arith.constant 0 : index
    %c0_8 = arith.constant 0 : index
    %9 = vector.load %arg4[%c0_6, %c0_7, %c0_8] : memref<2x128x128xbf16, #tpu.memory_space<vmem>>, vector<1x128x128xbf16>
    %10 = vector.shape_cast %9 : vector<1x128x128xbf16> to vector<128x128xbf16>
    %cst_9 = arith.constant dense<0.000000e+00> : vector<16x128xf32>
    %11 = tpu.matmul %8, %10, %cst_9 {dimension_numbers = #tpu.dot_dimension_numbers<[1], [0], [0], [1], [0, 0, 1, 1], [], []>} : vector<16x128xbf16>, vector<128x128xbf16>, vector<16x128xf32> -> vector<16x128xf32>
    %c0_10 = arith.constant 0 : index
    %c0_11 = arith.constant 0 : index
    %c0_12 = arith.constant 0 : index
    %12 = vector.load %arg5[%c0_10, %c0_11, %c0_12] : memref<2x1x128xf32, #tpu.memory_space<vmem>>, vector<1x1x128xf32>
    %13 = vector.shape_cast %12 : vector<1x1x128xf32> to vector<1x128xf32>
    %14 = vector.broadcast %13 : vector<1x128xf32> to vector<16x128xf32>
    %15 = arith.addf %11, %14 : vector<16x128xf32>
    %cst_13 = arith.constant 0.000000e+00 : f32
    %16 = vector.broadcast %cst_13 : f32 to vector<16x128xf32>
    %17 = arith.maximumf %15, %16 : vector<16x128xf32>
    %18 = arith.truncf %17 : vector<16x128xf32> to vector<16x128xbf16>
    %c1 = arith.constant 1 : index
    %c0_14 = arith.constant 0 : index
    %c0_15 = arith.constant 0 : index
    %19 = vector.load %arg4[%c1, %c0_14, %c0_15] : memref<2x128x128xbf16, #tpu.memory_space<vmem>>, vector<1x128x128xbf16>
    %20 = vector.shape_cast %19 : vector<1x128x128xbf16> to vector<128x128xbf16>
    %cst_16 = arith.constant dense<0.000000e+00> : vector<16x128xf32>
    %21 = tpu.matmul %18, %20, %cst_16 {dimension_numbers = #tpu.dot_dimension_numbers<[1], [0], [0], [1], [0, 0, 1, 1], [], []>} : vector<16x128xbf16>, vector<128x128xbf16>, vector<16x128xf32> -> vector<16x128xf32>
    %c1_17 = arith.constant 1 : index
    %c0_18 = arith.constant 0 : index
    %c0_19 = arith.constant 0 : index
    %22 = vector.load %arg5[%c1_17, %c0_18, %c0_19] : memref<2x1x128xf32, #tpu.memory_space<vmem>>, vector<1x1x128xf32>
    %23 = vector.shape_cast %22 : vector<1x1x128xf32> to vector<1x128xf32>
    %24 = vector.broadcast %23 : vector<1x128xf32> to vector<16x128xf32>
    %25 = arith.addf %21, %24 : vector<16x128xf32>
    %cst_20 = arith.constant 0.000000e+00 : f32
    %26 = vector.broadcast %cst_20 : f32 to vector<16x128xf32>
    %27 = arith.maximumf %25, %26 : vector<16x128xf32>
    %28 = arith.truncf %27 : vector<16x128xf32> to vector<16x128xbf16>
    %c0_21 = arith.constant 0 : index
    %c0_22 = arith.constant 0 : index
    %29 = vector.load %arg6[%c0_21, %c0_22] : memref<128x128xbf16, #tpu.memory_space<vmem>>, vector<128x128xbf16>
    %cst_23 = arith.constant dense<0.000000e+00> : vector<16x128xf32>
    %30 = tpu.matmul %28, %29, %cst_23 {dimension_numbers = #tpu.dot_dimension_numbers<[1], [0], [0], [1], [0, 0, 1, 1], [], []>} : vector<16x128xbf16>, vector<128x128xbf16>, vector<16x128xf32> -> vector<16x128xf32>
    %c0_24 = arith.constant 0 : index
    %c0_25 = arith.constant 0 : index
    %31 = vector.load %arg7[%c0_24, %c0_25] : memref<1x128xf32, #tpu.memory_space<vmem>>, vector<1x128xf32>
    %32 = vector.broadcast %31 : vector<1x128xf32> to vector<16x128xf32>
    %33 = arith.addf %30, %32 : vector<16x128xf32>
    %c0_26 = arith.constant 0 : index
    %c0_27 = arith.constant 0 : index
    %34 = vector.load %arg8[%c0_26, %c0_27] : memref<16x128xf32, #tpu.memory_space<vmem>>, vector<16x128xf32>
    tpu.vector_store %arg8[%c0_26, %c0_27], %33 {strides = array<i32>} : memref<16x128xf32, #tpu.memory_space<vmem>>, vector<16x128xf32>,
    return
  }
  func.func @transform_0(%arg0: i32) -> (i32, i32) {
    %c0_i32 = arith.constant 0 : i32
    %c0_i32_0 = arith.constant 0 : i32
    return %arg0, %c0_i32 : i32, i32
  }
  func.func @transform_1(%arg0: i32) -> (i32, i32) {
    %c0_i32 = arith.constant 0 : i32
    %c0_i32_0 = arith.constant 0 : i32
    %c0_i32_1 = arith.constant 0 : i32
    return %c0_i32, %c0_i32_0 : i32, i32
  }
  func.func @transform_2(%arg0: i32) -> (i32, i32) {
    %c0_i32 = arith.constant 0 : i32
    %c0_i32_0 = arith.constant 0 : i32
    %c0_i32_1 = arith.constant 0 : i32
    return %c0_i32, %c0_i32_0 : i32, i32
  }
  func.func @transform_3(%arg0: i32) -> (i32, i32, i32) {
    %c0_i32 = arith.constant 0 : i32
    %c0_i32_0 = arith.constant 0 : i32
    %c0_i32_1 = arith.constant 0 : i32
    %c0_i32_2 = arith.constant 0 : i32
    return %c0_i32, %c0_i32_0, %c0_i32_1 : i32, i32, i32
  }
  func.func @transform_4(%arg0: i32) -> (i32, i32, i32) {
    %c0_i32 = arith.constant 0 : i32
    %c0_i32_0 = arith.constant 0 : i32
    %c0_i32_1 = arith.constant 0 : i32
    %c0_i32_2 = arith.constant 0 : i32
    return %c0_i32, %c0_i32_0, %c0_i32_1 : i32, i32, i32
  }
  func.func @transform_5(%arg0: i32) -> (i32, i32) {
    %c0_i32 = arith.constant 0 : i32
    %c0_i32_0 = arith.constant 0 : i32
    %c0_i32_1 = arith.constant 0 : i32
    return %c0_i32, %c0_i32_0 : i32, i32
  }
  func.func @transform_6(%arg0: i32) -> (i32, i32) {
    %c0_i32 = arith.constant 0 : i32
    %c0_i32_0 = arith.constant 0 : i32
    %c0_i32_1 = arith.constant 0 : i32
    return %c0_i32, %c0_i32_0 : i32, i32
  }
  func.func @transform_7(%arg0: i32) -> (i32, i32) {
    %c0_i32 = arith.constant 0 : i32
    %c0_i32_0 = arith.constant 0 : i32
    return %arg0, %c0_i32 : i32, i32
  }
}

</mosaic_0001>

<llo_original>
// kernel: mlp_forward.1
$region0: #{mlp_forward.1}
  #allocation0 [shape = 'u32[]', space=smem, size = 0x4, offset = 0x4, fixed_abs, tag = 'smem constant byte address 0x4 - core index']
  #allocation1 [shape = 'u32[144,128]{1,0:T(1,128)}', space=vmem, size = 0x12000, scoped, tag = 'internal scratch']
  %s0 = inlined_call_operand.vmem [shape: bf16[16,32], index: 0, kind: input, shape index: {}]
  %s1 = inlined_call_operand.vmem [shape: bf16[32,128], index: 1, kind: input, shape index: {}]
  %s2 = inlined_call_operand.vmem [shape: f32[1,128], index: 2, kind: input, shape index: {}]
  %s3 = inlined_call_operand.hbm [shape: bf16[2,128,128], index: 3, kind: input, shape index: {}]
  %s4 = inlined_call_operand.vmem [shape: f32[2,1,128], index: 4, kind: input, shape index: {}]
  %s5 = inlined_call_operand.hbm [shape: bf16[128,128], index: 5, kind: input, shape index: {}]
  %s6 = inlined_call_operand.vmem [shape: f32[1,128], index: 6, kind: input, shape index: {}]
  %s7 = inlined_call_operand.vmem [shape: f32[16,128], index: 7, kind: output, shape index: {}]
  %s8 = sld [smem:[#allocation0]]
  $region46: #{mlp_forward.1} parent=0
    _
  %s10 = ssub.s32 1, %s8
  %s11 = scalar_select 0, %s10, %s8
  $region1: #{mlp_forward.1} parent=0
    #allocation2 [shape = 'u8[65536]{0}', space=vmem, size = 0x10000, scoped, tag = 'input window, operand 3, single buffered']
    #allocation3 [shape = 's32[1]{0}', space=sflag, size = 0x4, scoped, tag = 'scoped memory for mlp_forward.1']
    #allocation4 [shape = 'u8[32768]{0}', space=vmem, size = 0x8000, scoped, tag = 'input window, operand 5, single buffered']
    #allocation5 [shape = 's32[1]{0}', space=sflag, size = 0x4, scoped, tag = 'scoped memory for mlp_forward.1']
    %12 = vsyncpa [#allocation3], 0
    %13 = vsyncpa [#allocation5], 0
    // Predicated region
    $region2: #{mlp_forward.1} parent=1 // pred_check
      _
    $region3: #{mlp_forward.1} parent=1 // pred_check_branch
      %15 = sbr.rel (0) target = $region5
    $region4: #{mlp_forward.1} parent=1 // pred_region
      _
    $region5: #{mlp_forward.1} parent=1 // pred_fallthru
      _
    // Predicated region
    $region6: #{mlp_forward.1} parent=1 // pred_check
      _
    $region7: #{mlp_forward.1} parent=1 // pred_check_branch
      %17 = sbr.rel (0) target = $region9
    $region8: #{mlp_forward.1} parent=1 // pred_region
      _
    $region9: #{mlp_forward.1} parent=1 // pred_fallthru
      _
    // Predicated region
    $region10: #{mlp_forward.1} parent=1 // pred_check
      _
    $region11: #{mlp_forward.1} parent=1 // pred_check_branch
      %19 = sbr.rel (0) target = $region13
    $region12: #{mlp_forward.1} parent=1 // pred_region
      _
    $region13: #{mlp_forward.1} parent=1 // pred_fallthru
      _
    // Predicated region
    $region14: #{mlp_forward.1} parent=1 // pred_check
      _
    $region15: #{mlp_forward.1} parent=1 // pred_check_branch
      %21 = sbr.rel (0) target = $region17
    $region16: #{mlp_forward.1} parent=1 // pred_region
      %s23 = ssub.s32 2048, 2048
      %24 = vsyncadd [#allocation3], %s23
      %s25 = sshll.u32 [#allocation2], 4
      %s26 = int_to_ptr.vmem [resolvable:$true] %s25
      %31 = dma.hbm_to_vmem [thread:$0]  %s3, 2048, %s26, [#allocation3], 64, 64, 4
    $region17: #{mlp_forward.1} parent=1 // pred_fallthru
      _
    // Predicated region
    $region18: #{mlp_forward.1} parent=1 // pred_check
      _
    $region19: #{mlp_forward.1} parent=1 // pred_check_branch
      %33 = sbr.rel (0) target = $region21
    $region20: #{mlp_forward.1} parent=1 // pred_region
      _
    $region21: #{mlp_forward.1} parent=1 // pred_fallthru
      _
    // Predicated region
    $region22: #{mlp_forward.1} parent=1 // pred_check
      _
    $region23: #{mlp_forward.1} parent=1 // pred_check_branch
      %35 = sbr.rel (0) target = $region25
    $region24: #{mlp_forward.1} parent=1 // pred_region
      %s37 = ssub.s32 1024, 1024
      %38 = vsyncadd [#allocation5], %s37
      %s39 = sshll.u32 [#allocation4], 4
      %s40 = int_to_ptr.vmem [resolvable:$true] %s39
      %45 = dma.hbm_to_vmem [thread:$0]  %s5, 1024, %s40, [#allocation5], 64, 64, 4
    $region25: #{mlp_forward.1} parent=1 // pred_fallthru
      _
    // Predicated region
    $region26: #{mlp_forward.1} parent=1 // pred_check
      _
    $region27: #{mlp_forward.1} parent=1 // pred_check_branch
      %47 = sbr.rel (0) target = $region29
    $region28: #{mlp_forward.1} parent=1 // pred_region
      _
    $region29: #{mlp_forward.1} parent=1 // pred_fallthru
      _
    // Predicated region
    $region30: #{mlp_forward.1} parent=1 // pred_check
      _
    $region31: #{mlp_forward.1} parent=1 // pred_check_branch
      %49 = sbr.rel (0) target = $region33
    $region32: #{mlp_forward.1} parent=1 // pred_region
      %50 = dma.done [#allocation3], 2048
    $region33: #{mlp_forward.1} parent=1 // pred_fallthru
      _
    // Predicated region
    $region34: #{mlp_forward.1} parent=1 // pred_check
      _
    $region35: #{mlp_forward.1} parent=1 // pred_check_branch
      %52 = sbr.rel (0) target = $region37
    $region36: #{mlp_forward.1} parent=1 // pred_region
      %53 = dma.done [#allocation5], 1024
    $region37: #{mlp_forward.1} parent=1 // pred_fallthru
      _
    %v55 = vld [vmem:[%s0] sm:$0xf]
    %v56 = vld [vmem:[%s0 + $0x4] sm:$0xf]
    %v57 = vld [vmem:[%s1] sm:$0xf]
    %v58 = vld [vmem:[%s1 + $0x4] sm:$0xf]
    %v59 = vld [vmem:[%s1 + $0x8] sm:$0xf]
    %v60 = vld [vmem:[%s1 + $0xc] sm:$0xf]
    %v61 = vld [vmem:[%s2] sm:$0x1]
    %v63 = vlaneseq
    %v64 = vshrl.u32 %v63, 7
    %v65 = vsub.s32 0, %v64
    %v66 = vrot.slane %v61, %v65
    %v70 = vunpack.c.l.b16 %v55
    %v71 = vunpack.c.l.b16 %v56
    %v72 = vpack.c.b16 %v71, %v70
    %v77 = vunpack.c.l.b16 %v57
    %v78 = vunpack.c.l.b16 %v58
    %v79 = vunpack.c.l.b16 %v59
    %v80 = vunpack.c.l.b16 %v60
    %v81 = vpack.c.b16 %v78, %v77
    %v82 = vpack.c.b16 %v80, %v79
    %vm85 = vcmask 261120
    %v87 = vsel %vm85, %v72, 0
    %89 = vmatprep.subr.bf16.mxu0 0
    %90 = vmatpush1.bf16.msra.mxu0 0
    %91 = vmatprep.subr.bf16.mxu0 0
    %92 = vmatpush1.bf16.msra.mxu0 0
    %93 = vmatprep.subr.bf16.mxu0 0
    %94 = vmatpush1.bf16.msra.mxu0 0
    %95 = vmatprep.subr.bf16.mxu0 0
    %96 = vmatpush1.bf16.msra.mxu0 0
    %97 = vmatprep.subr.bf16.mxu0 0
    %98 = vmatpush1.bf16.msra.mxu0 0
    %99 = vmatprep.subr.bf16.mxu0 0
    %100 = vmatpush1.bf16.msra.mxu0 0
    %101 = vmatprep.subr.bf16.mxu0 0
    %102 = vmatpush1.bf16.msra.mxu0 %v82
    %103 = vmatprep.subr.bf16.mxu0 0
    %104 = vmatpush1.bf16.msra.mxu0 %v81
    %105 = vmatprep.subr.bf16.mxu0 0
    %106 = vmatpush2.bf16.msra.mxu0 0
    %107 = vmatprep.subr.bf16.mxu0 0
    %108 = vmatpush2.bf16.msra.mxu0 0
    %109 = vmatprep.subr.bf16.mxu0 0
    %110 = vmatpush2.bf16.msra.mxu0 0
    %111 = vmatprep.subr.bf16.mxu0 0
    %112 = vmatpush2.bf16.msra.mxu0 0
    %113 = vmatprep.subr.bf16.mxu0 0
    %114 = vmatpush2.bf16.msra.mxu0 0
    %115 = vmatprep.subr.bf16.mxu0 0
    %116 = vmatpush2.bf16.msra.mxu0 0
    %117 = vmatprep.subr.bf16.mxu0 0
    %118 = vmatpush2.bf16.msra.mxu0 0
    %119 = vmatprep.subr.bf16.mxu0 0
    %120 = vmatpush2.bf16.msra.mxu0 0
    %121 = vmatprep.mubr.bf16.mxu0 0
    %122 = vmatmul.mubr.bf16.gmra.mxu0 %v87
    %v123 = vpop.f32.mrf.mxu0
    %v124 = vadd.f32 %v66, %v123
    %v125 = vpop.f32.mrf.mxu0
    %v126 = vpop.f32.mrf.mxu0
    %v127 = vadd.f32 %v66, %v126
    %v128 = vpop.f32.mrf.mxu0
    %129 = vdwg.mxu0
    %v130 = vmax.f32 %v124, 0.0
    %v131 = vmax.f32 %v127, 0.0
    %v132 = vpack.c.bf16 %v131, %v130
    %v133 = vld [vmem:[#allocation2] sm:$0xf]
    %v134 = vld [vmem:[#allocation2 + $0x4] sm:$0xf]
    %v135 = vld [vmem:[#allocation2 + $0x8] sm:$0xf]
    %v136 = vld [vmem:[#allocation2 + $0xc] sm:$0xf]
    %v137 = vld [vmem:[#allocation2 + $0x10] sm:$0xf]
    %v138 = vld [vmem:[#allocation2 + $0x14] sm:$0xf]
    %v139 = vld [vmem:[#allocation2 + $0x18] sm:$0xf]
    %v140 = vld [vmem:[#allocation2 + $0x1c] sm:$0xf]
    %v141 = vld [vmem:[#allocation2 + $0x20] sm:$0xf]
    %v142 = vld [vmem:[#allocation2 + $0x24] sm:$0xf]
    %v143 = vld [vmem:[#allocation2 + $0x28] sm:$0xf]
    %v144 = vld [vmem:[#allocation2 + $0x2c] sm:$0xf]
    %v145 = vld [vmem:[#allocation2 + $0x30] sm:$0xf]
    %v146 = vld [vmem:[#allocation2 + $0x34] sm:$0xf]
    %v147 = vld [vmem:[#allocation2 + $0x38] sm:$0xf]
    %v148 = vld [vmem:[#allocation2 + $0x3c] sm:$0xf]
    %v149 = vld [vmem:[%s4] sm:$0x1]
    %v151 = vlaneseq
    %v152 = vshrl.u32 %v151, 7
    %v153 = vsub.s32 0, %v152
    %v154 = vrot.slane %v149, %v153
    %v172 = vunpack.c.l.b16 %v133
    %v173 = vunpack.c.l.b16 %v134
    %v174 = vunpack.c.l.b16 %v135
    %v175 = vunpack.c.l.b16 %v136
    %v176 = vunpack.c.l.b16 %v137
    %v177 = vunpack.c.l.b16 %v138
    %v178 = vunpack.c.l.b16 %v139
    %v179 = vunpack.c.l.b16 %v140
    %v180 = vunpack.c.l.b16 %v141
    %v181 = vunpack.c.l.b16 %v142
    %v182 = vunpack.c.l.b16 %v143
    %v183 = vunpack.c.l.b16 %v144
    %v184 = vunpack.c.l.b16 %v145
    %v185 = vunpack.c.l.b16 %v146
    %v186 = vunpack.c.l.b16 %v147
    %v187 = vunpack.c.l.b16 %v148
    %v188 = vpack.c.b16 %v173, %v172
    %v189 = vpack.c.b16 %v175, %v174
    %v190 = vpack.c.b16 %v177, %v176
    %v191 = vpack.c.b16 %v179, %v178
    %v192 = vpack.c.b16 %v181, %v180
    %v193 = vpack.c.b16 %v183, %v182
    %v194 = vpack.c.b16 %v185, %v184
    %v195 = vpack.c.b16 %v187, %v186
    %204 = vmatprep.subr.bf16.mxu0 0
    %205 = vmatpush1.bf16.msra.mxu0 %v195
    %206 = vmatprep.subr.bf16.mxu0 0
    %207 = vmatpush1.bf16.msra.mxu0 %v194
    %208 = vmatprep.subr.bf16.mxu0 0
    %209 = vmatpush1.bf16.msra.mxu0 %v193
    %210 = vmatprep.subr.bf16.mxu0 0
    %211 = vmatpush1.bf16.msra.mxu0 %v192
    %212 = vmatprep.subr.bf16.mxu0 0
    %213 = vmatpush1.bf16.msra.mxu0 %v191
    %214 = vmatprep.subr.bf16.mxu0 0
    %215 = vmatpush1.bf16.msra.mxu0 %v190
    %216 = vmatprep.subr.bf16.mxu0 0
    %217 = vmatpush1.bf16.msra.mxu0 %v189
    %218 = vmatprep.subr.bf16.mxu0 0
    %219 = vmatpush1.bf16.msra.mxu0 %v188
    %220 = vmatprep.subr.bf16.mxu0 0
    %221 = vmatpush2.bf16.msra.mxu0 0
    %222 = vmatprep.subr.bf16.mxu0 0
    %223 = vmatpush2.bf16.msra.mxu0 0
    %224 = vmatprep.subr.bf16.mxu0 0
    %225 = vmatpush2.bf16.msra.mxu0 0
    %226 = vmatprep.subr.bf16.mxu0 0
    %227 = vmatpush2.bf16.msra.mxu0 0
    %228 = vmatprep.subr.bf16.mxu0 0
    %229 = vmatpush2.bf16.msra.mxu0 0
    %230 = vmatprep.subr.bf16.mxu0 0
    %231 = vmatpush2.bf16.msra.mxu0 0
    %232 = vmatprep.subr.bf16.mxu0 0
    %233 = vmatpush2.bf16.msra.mxu0 0
    %234 = vmatprep.subr.bf16.mxu0 0
    %235 = vmatpush2.bf16.msra.mxu0 0
    %236 = vmatprep.mubr.bf16.mxu0 0
    %237 = vmatmul.mubr.bf16.gmra.mxu0 %v132
    %v238 = vpop.f32.mrf.mxu0
    %v239 = vadd.f32 %v154, %v238
    %v240 = vpop.f32.mrf.mxu0
    %v241 = vpop.f32.mrf.mxu0
    %v242 = vadd.f32 %v154, %v241
    %v243 = vpop.f32.mrf.mxu0
    %244 = vdwg.mxu0
    %v245 = vmax.f32 %v239, 0.0
    %v246 = vmax.f32 %v242, 0.0
    %v247 = vpack.c.bf16 %v246, %v245
    %s248 = scalar_lea.vmem [#allocation2], 64
    %v249 = vld [vmem:[%s248] sm:$0xf]
    %v250 = vld [vmem:[%s248 + $0x4] sm:$0xf]
    %v251 = vld [vmem:[%s248 + $0x8] sm:$0xf]
    %v252 = vld [vmem:[%s248 + $0xc] sm:$0xf]
    %v253 = vld [vmem:[%s248 + $0x10] sm:$0xf]
    %v254 = vld [vmem:[%s248 + $0x14] sm:$0xf]
    %v255 = vld [vmem:[%s248 + $0x18] sm:$0xf]
    %v256 = vld [vmem:[%s248 + $0x1c] sm:$0xf]
    %v257 = vld [vmem:[%s248 + $0x20] sm:$0xf]
    %v258 = vld [vmem:[%s248 + $0x24] sm:$0xf]
    %v259 = vld [vmem:[%s248 + $0x28] sm:$0xf]
    %v260 = vld [vmem:[%s248 + $0x2c] sm:$0xf]
    %v261 = vld [vmem:[%s248 + $0x30] sm:$0xf]
    %v262 = vld [vmem:[%s248 + $0x34] sm:$0xf]
    %v263 = vld [vmem:[%s248 + $0x38] sm:$0xf]
    %v264 = vld [vmem:[%s248 + $0x3c] sm:$0xf]
    %s265 = scalar_lea.vmem %s4, 1
    %v266 = vld [vmem:[%s265] sm:$0x1]
    %v268 = vlaneseq
    %v269 = vshrl.u32 %v268, 7
    %v270 = vsub.s32 0, %v269
    %v271 = vrot.slane %v266, %v270
    %v289 = vunpack.c.l.b16 %v249
    %v290 = vunpack.c.l.b16 %v250
    %v291 = vunpack.c.l.b16 %v251
    %v292 = vunpack.c.l.b16 %v252
    %v293 = vunpack.c.l.b16 %v253
    %v294 = vunpack.c.l.b16 %v254
    %v295 = vunpack.c.l.b16 %v255
    %v296 = vunpack.c.l.b16 %v256
    %v297 = vunpack.c.l.b16 %v257
    %v298 = vunpack.c.l.b16 %v258
    %v299 = vunpack.c.l.b16 %v259
    %v300 = vunpack.c.l.b16 %v260
    %v301 = vunpack.c.l.b16 %v261
    %v302 = vunpack.c.l.b16 %v262
    %v303 = vunpack.c.l.b16 %v263
    %v304 = vunpack.c.l.b16 %v264
    %v305 = vpack.c.b16 %v290, %v289
    %v306 = vpack.c.b16 %v292, %v291
    %v307 = vpack.c.b16 %v294, %v293
    %v308 = vpack.c.b16 %v296, %v295
    %v309 = vpack.c.b16 %v298, %v297
    %v310 = vpack.c.b16 %v300, %v299
    %v311 = vpack.c.b16 %v302, %v301
    %v312 = vpack.c.b16 %v304, %v303
    %321 = vmatprep.subr.bf16.mxu0 0
    %322 = vmatpush1.bf16.msra.mxu0 %v312
    %323 = vmatprep.subr.bf16.mxu0 0
    %324 = vmatpush1.bf16.msra.mxu0 %v311
    %325 = vmatprep.subr.bf16.mxu0 0
    %326 = vmatpush1.bf16.msra.mxu0 %v310
    %327 = vmatprep.subr.bf16.mxu0 0
    %328 = vmatpush1.bf16.msra.mxu0 %v309
    %329 = vmatprep.subr.bf16.mxu0 0
    %330 = vmatpush1.bf16.msra.mxu0 %v308
    %331 = vmatprep.subr.bf16.mxu0 0
    %332 = vmatpush1.bf16.msra.mxu0 %v307
    %333 = vmatprep.subr.bf16.mxu0 0
    %334 = vmatpush1.bf16.msra.mxu0 %v306
    %335 = vmatprep.subr.bf16.mxu0 0
    %336 = vmatpush1.bf16.msra.mxu0 %v305
    %337 = vmatprep.subr.bf16.mxu0 0
    %338 = vmatpush2.bf16.msra.mxu0 0
    %339 = vmatprep.subr.bf16.mxu0 0
    %340 = vmatpush2.bf16.msra.mxu0 0
    %341 = vmatprep.subr.bf16.mxu0 0
    %342 = vmatpush2.bf16.msra.mxu0 0
    %343 = vmatprep.subr.bf16.mxu0 0
    %344 = vmatpush2.bf16.msra.mxu0 0
    %345 = vmatprep.subr.bf16.mxu0 0
    %346 = vmatpush2.bf16.msra.mxu0 0
    %347 = vmatprep.subr.bf16.mxu0 0
    %348 = vmatpush2.bf16.msra.mxu0 0
    %349 = vmatprep.subr.bf16.mxu0 0
    %350 = vmatpush2.bf16.msra.mxu0 0
    %351 = vmatprep.subr.bf16.mxu0 0
    %352 = vmatpush2.bf16.msra.mxu0 0
    %353 = vmatprep.mubr.bf16.mxu0 0
    %354 = vmatmul.mubr.bf16.gmra.mxu0 %v247
    %v355 = vpop.f32.mrf.mxu0
    %v356 = vadd.f32 %v271, %v355
    %v357 = vpop.f32.mrf.mxu0
    %v358 = vpop.f32.mrf.mxu0
    %v359 = vadd.f32 %v271, %v358
    %v360 = vpop.f32.mrf.mxu0
    %361 = vdwg.mxu0
    %v362 = vmax.f32 %v356, 0.0
    %v363 = vmax.f32 %v359, 0.0
    %v364 = vpack.c.bf16 %v363, %v362
    %v365 = vld [vmem:[#allocation4] sm:$0xf]
    %v366 = vld [vmem:[#allocation4 + $0x4] sm:$0xf]
    %v367 = vld [vmem:[#allocation4 + $0x8] sm:$0xf]
    %v368 = vld [vmem:[#allocation4 + $0xc] sm:$0xf]
    %v369 = vld [vmem:[#allocation4 + $0x10] sm:$0xf]
    %v370 = vld [vmem:[#allocation4 + $0x14] sm:$0xf]
    %v371 = vld [vmem:[#allocation4 + $0x18] sm:$0xf]
    %v372 = vld [vmem:[#allocation4 + $0x1c] sm:$0xf]
    %v373 = vld [vmem:[#allocation4 + $0x20] sm:$0xf]
    %v374 = vld [vmem:[#allocation4 + $0x24] sm:$0xf]
    %v375 = vld [vmem:[#allocation4 + $0x28] sm:$0xf]
    %v376 = vld [vmem:[#allocation4 + $0x2c] sm:$0xf]
    %v377 = vld [vmem:[#allocation4 + $0x30] sm:$0xf]
    %v378 = vld [vmem:[#allocation4 + $0x34] sm:$0xf]
    %v379 = vld [vmem:[#allocation4 + $0x38] sm:$0xf]
    %v380 = vld [vmem:[#allocation4 + $0x3c] sm:$0xf]
    %v381 = vld [vmem:[%s6] sm:$0x1]
    %v383 = vlaneseq
    %v384 = vshrl.u32 %v383, 7
    %v385 = vsub.s32 0, %v384
    %v386 = vrot.slane %v381, %v385
    %v404 = vunpack.c.l.b16 %v365
    %v405 = vunpack.c.l.b16 %v366
    %v406 = vunpack.c.l.b16 %v367
    %v407 = vunpack.c.l.b16 %v368
    %v408 = vunpack.c.l.b16 %v369
    %v409 = vunpack.c.l.b16 %v370
    %v410 = vunpack.c.l.b16 %v371
    %v411 = vunpack.c.l.b16 %v372
    %v412 = vunpack.c.l.b16 %v373
    %v413 = vunpack.c.l.b16 %v374
    %v414 = vunpack.c.l.b16 %v375
    %v415 = vunpack.c.l.b16 %v376
    %v416 = vunpack.c.l.b16 %v377
    %v417 = vunpack.c.l.b16 %v378
    %v418 = vunpack.c.l.b16 %v379
    %v419 = vunpack.c.l.b16 %v380
    %v420 = vpack.c.b16 %v405, %v404
    %v421 = vpack.c.b16 %v407, %v406
    %v422 = vpack.c.b16 %v409, %v408
    %v423 = vpack.c.b16 %v411, %v410
    %v424 = vpack.c.b16 %v413, %v412
    %v425 = vpack.c.b16 %v415, %v414
    %v426 = vpack.c.b16 %v417, %v416
    %v427 = vpack.c.b16 %v419, %v418
    %436 = vmatprep.subr.bf16.mxu0 0
    %437 = vmatpush1.bf16.msra.mxu0 %v427
    %438 = vmatprep.subr.bf16.mxu0 0
    %439 = vmatpush1.bf16.msra.mxu0 %v426
    %440 = vmatprep.subr.bf16.mxu0 0
    %441 = vmatpush1.bf16.msra.mxu0 %v425
    %442 = vmatprep.subr.bf16.mxu0 0
    %443 = vmatpush1.bf16.msra.mxu0 %v424
    %444 = vmatprep.subr.bf16.mxu0 0
    %445 = vmatpush1.bf16.msra.mxu0 %v423
    %446 = vmatprep.subr.bf16.mxu0 0
    %447 = vmatpush1.bf16.msra.mxu0 %v422
    %448 = vmatprep.subr.bf16.mxu0 0
    %449 = vmatpush1.bf16.msra.mxu0 %v421
    %450 = vmatprep.subr.bf16.mxu0 0
    %451 = vmatpush1.bf16.msra.mxu0 %v420
    %452 = vmatprep.subr.bf16.mxu0 0
    %453 = vmatpush2.bf16.msra.mxu0 0
    %454 = vmatprep.subr.bf16.mxu0 0
    %455 = vmatpush2.bf16.msra.mxu0 0
    %456 = vmatprep.subr.bf16.mxu0 0
    %457 = vmatpush2.bf16.msra.mxu0 0
    %458 = vmatprep.subr.bf16.mxu0 0
    %459 = vmatpush2.bf16.msra.mxu0 0
    %460 = vmatprep.subr.bf16.mxu0 0
    %461 = vmatpush2.bf16.msra.mxu0 0
    %462 = vmatprep.subr.bf16.mxu0 0
    %463 = vmatpush2.bf16.msra.mxu0 0
    %464 = vmatprep.subr.bf16.mxu0 0
    %465 = vmatpush2.bf16.msra.mxu0 0
    %466 = vmatprep.subr.bf16.mxu0 0
    %467 = vmatpush2.bf16.msra.mxu0 0
    %468 = vmatprep.mubr.bf16.mxu0 0
    %469 = vmatmul.mubr.bf16.gmra.mxu0 %v364
    %v470 = vpop.f32.mrf.mxu0
    %v471 = vadd.f32 %v386, %v470
    %v472 = vpop.f32.mrf.mxu0
    %v473 = vpop.f32.mrf.mxu0
    %v474 = vadd.f32 %v386, %v473
    %v475 = vpop.f32.mrf.mxu0
    %476 = vdwg.mxu0
    %477 = vst [vmem:[%s7] sm:$0xff] %v471
    %478 = vst [vmem:[%s7 + $0x8] sm:$0xff] %v474
    // Predicated region
    $region38: #{mlp_forward.1} parent=1 // pred_check
      _
    $region39: #{mlp_forward.1} parent=1 // pred_check_branch
      %480 = sbr.rel (0) target = $region41
    $region40: #{mlp_forward.1} parent=1 // pred_region
      _
    $region41: #{mlp_forward.1} parent=1 // pred_fallthru
      _
    // Predicated region
    $region42: #{mlp_forward.1} parent=1 // pred_check
      _
    $region43: #{mlp_forward.1} parent=1 // pred_check_branch
      %482 = sbr.rel (0) target = $region45
    $region44: #{mlp_forward.1} parent=1 // pred_region
      _
    $region45: #{mlp_forward.1} parent=1 // pred_fallthru
      _
    %483 = vsyncpa [#allocation3], 1
    %484 = vsyncpa [#allocation5], 1

// kernel: mlp_forward.1
$region0: #{mlp_forward.1}
  #allocation0 [shape = 'u32[]', space=smem, size = 0x4, offset = 0x4, fixed_abs, tag = 'smem constant byte address 0x4 - core index']
  #allocation1 [shape = 'u32[144,128]{1,0:T(1,128)}', space=vmem, size = 0x12000, scoped, tag = 'internal scratch']
  %s0 = inlined_call_operand.vmem [shape: bf16[16,32], index: 0, kind: input, shape index: {}]
  %s1 = inlined_call_operand.vmem [shape: bf16[32,128], index: 1, kind: input, shape index: {}]
  %s2 = inlined_call_operand.vmem [shape: f32[1,128], index: 2, kind: input, shape index: {}]
  %s3 = inlined_call_operand.hbm [shape: bf16[2,128,128], index: 3, kind: input, shape index: {}]
  %s4 = inlined_call_operand.vmem [shape: f32[2,1,128], index: 4, kind: input, shape index: {}]
  %s5 = inlined_call_operand.hbm [shape: bf16[128,128], index: 5, kind: input, shape index: {}]
  %s6 = inlined_call_operand.vmem [shape: f32[1,128], index: 6, kind: input, shape index: {}]
  %s7 = inlined_call_operand.vmem [shape: f32[16,128], index: 7, kind: output, shape index: {}]
  %s8 = sld [smem:[#allocation0]]
  $region46: #{mlp_forward.1} parent=0
    _
  %s10 = ssub.s32 1, %s8
  %s11 = scalar_select 0, %s10, %s8
  $region1: #{mlp_forward.1} parent=0
    #allocation2 [shape = 'u8[65536]{0}', space=vmem, size = 0x10000, scoped, tag = 'input window, operand 3, single buffered']
    #allocation3 [shape = 's32[1]{0}', space=sflag, size = 0x4, scoped, tag = 'scoped memory for mlp_forward.1']
    #allocation4 [shape = 'u8[32768]{0}', space=vmem, size = 0x8000, scoped, tag = 'input window, operand 5, single buffered']
    #allocation5 [shape = 's32[1]{0}', space=sflag, size = 0x4, scoped, tag = 'scoped memory for mlp_forward.1']
    %12 = vsyncpa [#allocation3], 0
    %13 = vsyncpa [#allocation5], 0
    // Predicated region
    $region2: #{mlp_forward.1} parent=1 // pred_check
      _
    $region3: #{mlp_forward.1} parent=1 // pred_check_branch
      %15 = sbr.rel (0) target = $region5
    $region4: #{mlp_forward.1} parent=1 // pred_region
      _
    $region5: #{mlp_forward.1} parent=1 // pred_fallthru
      _
    // Predicated region
    $region6: #{mlp_forward.1} parent=1 // pred_check
      _
    $region7: #{mlp_forward.1} parent=1 // pred_check_branch
      %17 = sbr.rel (0) target = $region9
    $region8: #{mlp_forward.1} parent=1 // pred_region
      _
    $region9: #{mlp_forward.1} parent=1 // pred_fallthru
      _
    // Predicated region
    $region10: #{mlp_forward.1} parent=1 // pred_check
      _
    $region11: #{mlp_forward.1} parent=1 // pred_check_branch
      %19 = sbr.rel (0) target = $region13
    $region12: #{mlp_forward.1} parent=1 // pred_region
      _
    $region13: #{mlp_forward.1} parent=1 // pred_fallthru
      _
    // Predicated region
    $region14: #{mlp_forward.1} parent=1 // pred_check
      _
    $region15: #{mlp_forward.1} parent=1 // pred_check_branch
      %21 = sbr.rel (0) target = $region17
    $region16: #{mlp_forward.1} parent=1 // pred_region
      %s23 = ssub.s32 2048, 2048
      %24 = vsyncadd [#allocation3], %s23
      %s25 = sshll.u32 [#allocation2], 4
      %s26 = int_to_ptr.vmem [resolvable:$true] %s25
      %31 = dma.hbm_to_vmem [thread:$0]  %s3, 2048, %s26, [#allocation3], 64, 64, 4
    $region17: #{mlp_forward.1} parent=1 // pred_fallthru
      _
    // Predicated region
    $region18: #{mlp_forward.1} parent=1 // pred_check
      _
    $region19: #{mlp_forward.1} parent=1 // pred_check_branch
      %33 = sbr.rel (0) target = $region21
    $region20: #{mlp_forward.1} parent=1 // pred_region
      _
    $region21: #{mlp_forward.1} parent=1 // pred_fallthru
      _
    // Predicated region
    $region22: #{mlp_forward.1} parent=1 // pred_check
      _
    $region23: #{mlp_forward.1} parent=1 // pred_check_branch
      %35 = sbr.rel (0) target = $region25
    $region24: #{mlp_forward.1} parent=1 // pred_region
      %s37 = ssub.s32 1024, 1024
      %38 = vsyncadd [#allocation5], %s37
      %s39 = sshll.u32 [#allocation4], 4
      %s40 = int_to_ptr.vmem [resolvable:$true] %s39
      %45 = dma.hbm_to_vmem [thread:$0]  %s5, 1024, %s40, [#allocation5], 64, 64, 4
    $region25: #{mlp_forward.1} parent=1 // pred_fallthru
      _
    // Predicated region
    $region26: #{mlp_forward.1} parent=1 // pred_check
      _
    $region27: #{mlp_forward.1} parent=1 // pred_check_branch
      %47 = sbr.rel (0) target = $region29
    $region28: #{mlp_forward.1} parent=1 // pred_region
      _
    $region29: #{mlp_forward.1} parent=1 // pred_fallthru
      _
    // Predicated region
    $region30: #{mlp_forward.1} parent=1 // pred_check
      _
    $region31: #{mlp_forward.1} parent=1 // pred_check_branch
      %49 = sbr.rel (0) target = $region33
    $region32: #{mlp_forward.1} parent=1 // pred_region
      %50 = dma.done [#allocation3], 2048
    $region33: #{mlp_forward.1} parent=1 // pred_fallthru
      _
    // Predicated region
    $region34: #{mlp_forward.1} parent=1 // pred_check
      _
    $region35: #{mlp_forward.1} parent=1 // pred_check_branch
      %52 = sbr.rel (0) target = $region37
    $region36: #{mlp_forward.1} parent=1 // pred_region
      %53 = dma.done [#allocation5], 1024
    $region37: #{mlp_forward.1} parent=1 // pred_fallthru
      _
    %v55 = vld [vmem:[%s0] sm:$0xf]
    %v56 = vld [vmem:[%s0 + $0x4] sm:$0xf]
    %v57 = vld [vmem:[%s1] sm:$0xf]
    %v58 = vld [vmem:[%s1 + $0x4] sm:$0xf]
    %v59 = vld [vmem:[%s1 + $0x8] sm:$0xf]
    %v60 = vld [vmem:[%s1 + $0xc] sm:$0xf]
    %v61 = vld [vmem:[%s2] sm:$0x1]
    %v63 = vlaneseq
    %v64 = vshrl.u32 %v63, 7
    %v65 = vsub.s32 0, %v64
    %v66 = vrot.slane %v61, %v65
    %v70 = vunpack.c.l.b16 %v55
    %v71 = vunpack.c.l.b16 %v56
    %v72 = vpack.c.b16 %v71, %v70
    %v77 = vunpack.c.l.b16 %v57
    %v78 = vunpack.c.l.b16 %v58
    %v79 = vunpack.c.l.b16 %v59
    %v80 = vunpack.c.l.b16 %v60
    %v81 = vpack.c.b16 %v78, %v77
    %v82 = vpack.c.b16 %v80, %v79
    %vm85 = vcmask 261120
    %v87 = vsel %vm85, %v72, 0
    %89 = vmatprep.subr.bf16.mxu0 0
    %90 = vmatpush1.bf16.msra.mxu0 0
    %91 = vmatprep.subr.bf16.mxu0 0
    %92 = vmatpush1.bf16.msra.mxu0 0
    %93 = vmatprep.subr.bf16.mxu0 0
    %94 = vmatpush1.bf16.msra.mxu0 0
    %95 = vmatprep.subr.bf16.mxu0 0
    %96 = vmatpush1.bf16.msra.mxu0 0
    %97 = vmatprep.subr.bf16.mxu0 0
    %98 = vmatpush1.bf16.msra.mxu0 0
    %99 = vmatprep.subr.bf16.mxu0 0
    %100 = vmatpush1.bf16.msra.mxu0 0
    %101 = vmatprep.subr.bf16.mxu0 0
    %102 = vmatpush1.bf16.msra.mxu0 %v82
    %103 = vmatprep.subr.bf16.mxu0 0
    %104 = vmatpush1.bf16.msra.mxu0 %v81
    %105 = vmatprep.subr.bf16.mxu0 0
    %106 = vmatpush2.bf16.msra.mxu0 0
    %107 = vmatprep.subr.bf16.mxu0 0
    %108 = vmatpush2.bf16.msra.mxu0 0
    %109 = vmatprep.subr.bf16.mxu0 0
    %110 = vmatpush2.bf16.msra.mxu0 0
    %111 = vmatprep.subr.bf16.mxu0 0
    %112 = vmatpush2.bf16.msra.mxu0 0
    %113 = vmatprep.subr.bf16.mxu0 0
    %114 = vmatpush2.bf16.msra.mxu0 0
    %115 = vmatprep.subr.bf16.mxu0 0
    %116 = vmatpush2.bf16.msra.mxu0 0
    %117 = vmatprep.subr.bf16.mxu0 0
    %118 = vmatpush2.bf16.msra.mxu0 0
    %119 = vmatprep.subr.bf16.mxu0 0
    %120 = vmatpush2.bf16.msra.mxu0 0
    %121 = vmatprep.mubr.bf16.mxu0 0
    %122 = vmatmul.mubr.bf16.gmra.mxu0 %v87
    %v123 = vpop.f32.mrf.mxu0
    %v124 = vadd.f32 %v66, %v123
    %v125 = vpop.f32.mrf.mxu0
    %v126 = vpop.f32.mrf.mxu0
    %v127 = vadd.f32 %v66, %v126
    %v128 = vpop.f32.mrf.mxu0
    %129 = vdwg.mxu0
    %v130 = vmax.f32 %v124, 0.0
    %v131 = vmax.f32 %v127, 0.0
    %v132 = vpack.c.bf16 %v131, %v130
    %v133 = vld [vmem:[#allocation2] sm:$0xf]
    %v134 = vld [vmem:[#allocation2 + $0x4] sm:$0xf]
    %v135 = vld [vmem:[#allocation2 + $0x8] sm:$0xf]
    %v136 = vld [vmem:[#allocation2 + $0xc] sm:$0xf]
    %v137 = vld [vmem:[#allocation2 + $0x10] sm:$0xf]
    %v138 = vld [vmem:[#allocation2 + $0x14] sm:$0xf]
    %v139 = vld [vmem:[#allocation2 + $0x18] sm:$0xf]
    %v140 = vld [vmem:[#allocation2 + $0x1c] sm:$0xf]
    %v141 = vld [vmem:[#allocation2 + $0x20] sm:$0xf]
    %v142 = vld [vmem:[#allocation2 + $0x24] sm:$0xf]
    %v143 = vld [vmem:[#allocation2 + $0x28] sm:$0xf]
    %v144 = vld [vmem:[#allocation2 + $0x2c] sm:$0xf]
    %v145 = vld [vmem:[#allocation2 + $0x30] sm:$0xf]
    %v146 = vld [vmem:[#allocation2 + $0x34] sm:$0xf]
    %v147 = vld [vmem:[#allocation2 + $0x38] sm:$0xf]
    %v148 = vld [vmem:[#allocation2 + $0x3c] sm:$0xf]
    %v149 = vld [vmem:[%s4] sm:$0x1]
    %v151 = vlaneseq
    %v152 = vshrl.u32 %v151, 7
    %v153 = vsub.s32 0, %v152
    %v154 = vrot.slane %v149, %v153
    %v172 = vunpack.c.l.b16 %v133
    %v173 = vunpack.c.l.b16 %v134
    %v174 = vunpack.c.l.b16 %v135
    %v175 = vunpack.c.l.b16 %v136
    %v176 = vunpack.c.l.b16 %v137
    %v177 = vunpack.c.l.b16 %v138
    %v178 = vunpack.c.l.b16 %v139
    %v179 = vunpack.c.l.b16 %v140
    %v180 = vunpack.c.l.b16 %v141
    %v181 = vunpack.c.l.b16 %v142
    %v182 = vunpack.c.l.b16 %v143
    %v183 = vunpack.c.l.b16 %v144
    %v184 = vunpack.c.l.b16 %v145
    %v185 = vunpack.c.l.b16 %v146
    %v186 = vunpack.c.l.b16 %v147
    %v187 = vunpack.c.l.b16 %v148
    %v188 = vpack.c.b16 %v173, %v172
    %v189 = vpack.c.b16 %v175, %v174
    %v190 = vpack.c.b16 %v177, %v176
    %v191 = vpack.c.b16 %v179, %v178
    %v192 = vpack.c.b16 %v181, %v180
    %v193 = vpack.c.b16 %v183, %v182
    %v194 = vpack.c.b16 %v185, %v184
    %v195 = vpack.c.b16 %v187, %v186
    %204 = vmatprep.subr.bf16.mxu0 0
    %205 = vmatpush1.bf16.msra.mxu0 %v195
    %206 = vmatprep.subr.bf16.mxu0 0
    %207 = vmatpush1.bf16.msra.mxu0 %v194
    %208 = vmatprep.subr.bf16.mxu0 0
    %209 = vmatpush1.bf16.msra.mxu0 %v193
    %210 = vmatprep.subr.bf16.mxu0 0
    %211 = vmatpush1.bf16.msra.mxu0 %v192
    %212 = vmatprep.subr.bf16.mxu0 0
    %213 = vmatpush1.bf16.msra.mxu0 %v191
    %214 = vmatprep.subr.bf16.mxu0 0
    %215 = vmatpush1.bf16.msra.mxu0 %v190
    %216 = vmatprep.subr.bf16.mxu0 0
    %217 = vmatpush1.bf16.msra.mxu0 %v189
    %218 = vmatprep.subr.bf16.mxu0 0
    %219 = vmatpush1.bf16.msra.mxu0 %v188
    %220 = vmatprep.subr.bf16.mxu0 0
    %221 = vmatpush2.bf16.msra.mxu0 0
    %222 = vmatprep.subr.bf16.mxu0 0
    %223 = vmatpush2.bf16.msra.mxu0 0
    %224 = vmatprep.subr.bf16.mxu0 0
    %225 = vmatpush2.bf16.msra.mxu0 0
    %226 = vmatprep.subr.bf16.mxu0 0
    %227 = vmatpush2.bf16.msra.mxu0 0
    %228 = vmatprep.subr.bf16.mxu0 0
    %229 = vmatpush2.bf16.msra.mxu0 0
    %230 = vmatprep.subr.bf16.mxu0 0
    %231 = vmatpush2.bf16.msra.mxu0 0
    %232 = vmatprep.subr.bf16.mxu0 0
    %233 = vmatpush2.bf16.msra.mxu0 0
    %234 = vmatprep.subr.bf16.mxu0 0
    %235 = vmatpush2.bf16.msra.mxu0 0
    %236 = vmatprep.mubr.bf16.mxu0 0
    %237 = vmatmul.mubr.bf16.gmra.mxu0 %v132
    %v238 = vpop.f32.mrf.mxu0
    %v239 = vadd.f32 %v154, %v238
    %v240 = vpop.f32.mrf.mxu0
    %v241 = vpop.f32.mrf.mxu0
    %v242 = vadd.f32 %v154, %v241
    %v243 = vpop.f32.mrf.mxu0
    %244 = vdwg.mxu0
    %v245 = vmax.f32 %v239, 0.0
    %v246 = vmax.f32 %v242, 0.0
    %v247 = vpack.c.bf16 %v246, %v245
    %s248 = scalar_lea.vmem [#allocation2], 64
    %v249 = vld [vmem:[%s248] sm:$0xf]
    %v250 = vld [vmem:[%s248 + $0x4] sm:$0xf]
    %v251 = vld [vmem:[%s248 + $0x8] sm:$0xf]
    %v252 = vld [vmem:[%s248 + $0xc] sm:$0xf]
    %v253 = vld [vmem:[%s248 + $0x10] sm:$0xf]
    %v254 = vld [vmem:[%s248 + $0x14] sm:$0xf]
    %v255 = vld [vmem:[%s248 + $0x18] sm:$0xf]
    %v256 = vld [vmem:[%s248 + $0x1c] sm:$0xf]
    %v257 = vld [vmem:[%s248 + $0x20] sm:$0xf]
    %v258 = vld [vmem:[%s248 + $0x24] sm:$0xf]
    %v259 = vld [vmem:[%s248 + $0x28] sm:$0xf]
    %v260 = vld [vmem:[%s248 + $0x2c] sm:$0xf]
    %v261 = vld [vmem:[%s248 + $0x30] sm:$0xf]
    %v262 = vld [vmem:[%s248 + $0x34] sm:$0xf]
    %v263 = vld [vmem:[%s248 + $0x38] sm:$0xf]
    %v264 = vld [vmem:[%s248 + $0x3c] sm:$0xf]
    %s265 = scalar_lea.vmem %s4, 1
    %v266 = vld [vmem:[%s265] sm:$0x1]
    %v268 = vlaneseq
    %v269 = vshrl.u32 %v268, 7
    %v270 = vsub.s32 0, %v269
    %v271 = vrot.slane %v266, %v270
    %v289 = vunpack.c.l.b16 %v249
    %v290 = vunpack.c.l.b16 %v250
    %v291 = vunpack.c.l.b16 %v251
    %v292 = vunpack.c.l.b16 %v252
    %v293 = vunpack.c.l.b16 %v253
    %v294 = vunpack.c.l.b16 %v254
    %v295 = vunpack.c.l.b16 %v255
    %v296 = vunpack.c.l.b16 %v256
    %v297 = vunpack.c.l.b16 %v257
    %v298 = vunpack.c.l.b16 %v258
    %v299 = vunpack.c.l.b16 %v259
    %v300 = vunpack.c.l.b16 %v260
    %v301 = vunpack.c.l.b16 %v261
    %v302 = vunpack.c.l.b16 %v262
    %v303 = vunpack.c.l.b16 %v263
    %v304 = vunpack.c.l.b16 %v264
    %v305 = vpack.c.b16 %v290, %v289
    %v306 = vpack.c.b16 %v292, %v291
    %v307 = vpack.c.b16 %v294, %v293
    %v308 = vpack.c.b16 %v296, %v295
    %v309 = vpack.c.b16 %v298, %v297
    %v310 = vpack.c.b16 %v300, %v299
    %v311 = vpack.c.b16 %v302, %v301
    %v312 = vpack.c.b16 %v304, %v303
    %321 = vmatprep.subr.bf16.mxu0 0
    %322 = vmatpush1.bf16.msra.mxu0 %v312
    %323 = vmatprep.subr.bf16.mxu0 0
    %324 = vmatpush1.bf16.msra.mxu0 %v311
    %325 = vmatprep.subr.bf16.mxu0 0
    %326 = vmatpush1.bf16.msra.mxu0 %v310
    %327 = vmatprep.subr.bf16.mxu0 0
    %328 = vmatpush1.bf16.msra.mxu0 %v309
    %329 = vmatprep.subr.bf16.mxu0 0
    %330 = vmatpush1.bf16.msra.mxu0 %v308
    %331 = vmatprep.subr.bf16.mxu0 0
    %332 = vmatpush1.bf16.msra.mxu0 %v307
    %333 = vmatprep.subr.bf16.mxu0 0
    %334 = vmatpush1.bf16.msra.mxu0 %v306
    %335 = vmatprep.subr.bf16.mxu0 0
    %336 = vmatpush1.bf16.msra.mxu0 %v305
    %337 = vmatprep.subr.bf16.mxu0 0
    %338 = vmatpush2.bf16.msra.mxu0 0
    %339 = vmatprep.subr.bf16.mxu0 0
    %340 = vmatpush2.bf16.msra.mxu0 0
    %341 = vmatprep.subr.bf16.mxu0 0
    %342 = vmatpush2.bf16.msra.mxu0 0
    %343 = vmatprep.subr.bf16.mxu0 0
    %344 = vmatpush2.bf16.msra.mxu0 0
    %345 = vmatprep.subr.bf16.mxu0 0
    %346 = vmatpush2.bf16.msra.mxu0 0
    %347 = vmatprep.subr.bf16.mxu0 0
    %348 = vmatpush2.bf16.msra.mxu0 0
    %349 = vmatprep.subr.bf16.mxu0 0
    %350 = vmatpush2.bf16.msra.mxu0 0
    %351 = vmatprep.subr.bf16.mxu0 0
    %352 = vmatpush2.bf16.msra.mxu0 0
    %353 = vmatprep.mubr.bf16.mxu0 0
    %354 = vmatmul.mubr.bf16.gmra.mxu0 %v247
    %v355 = vpop.f32.mrf.mxu0
    %v356 = vadd.f32 %v271, %v355
    %v357 = vpop.f32.mrf.mxu0
    %v358 = vpop.f32.mrf.mxu0
    %v359 = vadd.f32 %v271, %v358
    %v360 = vpop.f32.mrf.mxu0
    %361 = vdwg.mxu0
    %v362 = vmax.f32 %v356, 0.0
    %v363 = vmax.f32 %v359, 0.0
    %v364 = vpack.c.bf16 %v363, %v362
    %v365 = vld [vmem:[#allocation4] sm:$0xf]
    %v366 = vld [vmem:[#allocation4 + $0x4] sm:$0xf]
    %v367 = vld [vmem:[#allocation4 + $0x8] sm:$0xf]
    %v368 = vld [vmem:[#allocation4 + $0xc] sm:$0xf]
    %v369 = vld [vmem:[#allocation4 + $0x10] sm:$0xf]
    %v370 = vld [vmem:[#allocation4 + $0x14] sm:$0xf]
    %v371 = vld [vmem:[#allocation4 + $0x18] sm:$0xf]
    %v372 = vld [vmem:[#allocation4 + $0x1c] sm:$0xf]
    %v373 = vld [vmem:[#allocation4 + $0x20] sm:$0xf]
    %v374 = vld [vmem:[#allocation4 + $0x24] sm:$0xf]
    %v375 = vld [vmem:[#allocation4 + $0x28] sm:$0xf]
    %v376 = vld [vmem:[#allocation4 + $0x2c] sm:$0xf]
    %v377 = vld [vmem:[#allocation4 + $0x30] sm:$0xf]
    %v378 = vld [vmem:[#allocation4 + $0x34] sm:$0xf]
    %v379 = vld [vmem:[#allocation4 + $0x38] sm:$0xf]
    %v380 = vld [vmem:[#allocation4 + $0x3c] sm:$0xf]
    %v381 = vld [vmem:[%s6] sm:$0x1]
    %v383 = vlaneseq
    %v384 = vshrl.u32 %v383, 7
    %v385 = vsub.s32 0, %v384
    %v386 = vrot.slane %v381, %v385
    %v404 = vunpack.c.l.b16 %v365
    %v405 = vunpack.c.l.b16 %v366
    %v406 = vunpack.c.l.b16 %v367
    %v407 = vunpack.c.l.b16 %v368
    %v408 = vunpack.c.l.b16 %v369
    %v409 = vunpack.c.l.b16 %v370
    %v410 = vunpack.c.l.b16 %v371
    %v411 = vunpack.c.l.b16 %v372
    %v412 = vunpack.c.l.b16 %v373
    %v413 = vunpack.c.l.b16 %v374
    %v414 = vunpack.c.l.b16 %v375
    %v415 = vunpack.c.l.b16 %v376
    %v416 = vunpack.c.l.b16 %v377
    %v417 = vunpack.c.l.b16 %v378
    %v418 = vunpack.c.l.b16 %v379
    %v419 = vunpack.c.l.b16 %v380
    %v420 = vpack.c.b16 %v405, %v404
    %v421 = vpack.c.b16 %v407, %v406
    %v422 = vpack.c.b16 %v409, %v408
    %v423 = vpack.c.b16 %v411, %v410
    %v424 = vpack.c.b16 %v413, %v412
    %v425 = vpack.c.b16 %v415, %v414
    %v426 = vpack.c.b16 %v417, %v416
    %v427 = vpack.c.b16 %v419, %v418
    %436 = vmatprep.subr.bf16.mxu0 0
    %437 = vmatpush1.bf16.msra.mxu0 %v427
    %438 = vmatprep.subr.bf16.mxu0 0
    %439 = vmatpush1.bf16.msra.mxu0 %v426
    %440 = vmatprep.subr.bf16.mxu0 0
    %441 = vmatpush1.bf16.msra.mxu0 %v425
    %442 = vmatprep.subr.bf16.mxu0 0
    %443 = vmatpush1.bf16.msra.mxu0 %v424
    %444 = vmatprep.subr.bf16.mxu0 0
    %445 = vmatpush1.bf16.msra.mxu0 %v423
    %446 = vmatprep.subr.bf16.mxu0 0
    %447 = vmatpush1.bf16.msra.mxu0 %v422
    %448 = vmatprep.subr.bf16.mxu0 0
    %449 = vmatpush1.bf16.msra.mxu0 %v421
    %450 = vmatprep.subr.bf16.mxu0 0
    %451 = vmatpush1.bf16.msra.mxu0 %v420
    %452 = vmatprep.subr.bf16.mxu0 0
    %453 = vmatpush2.bf16.msra.mxu0 0
    %454 = vmatprep.subr.bf16.mxu0 0
    %455 = vmatpush2.bf16.msra.mxu0 0
    %456 = vmatprep.subr.bf16.mxu0 0
    %457 = vmatpush2.bf16.msra.mxu0 0
    %458 = vmatprep.subr.bf16.mxu0 0
    %459 = vmatpush2.bf16.msra.mxu0 0
    %460 = vmatprep.subr.bf16.mxu0 0
    %461 = vmatpush2.bf16.msra.mxu0 0
    %462 = vmatprep.subr.bf16.mxu0 0
    %463 = vmatpush2.bf16.msra.mxu0 0
    %464 = vmatprep.subr.bf16.mxu0 0
    %465 = vmatpush2.bf16.msra.mxu0 0
    %466 = vmatprep.subr.bf16.mxu0 0
    %467 = vmatpush2.bf16.msra.mxu0 0
    %468 = vmatprep.mubr.bf16.mxu0 0
    %469 = vmatmul.mubr.bf16.gmra.mxu0 %v364
    %v470 = vpop.f32.mrf.mxu0
    %v471 = vadd.f32 %v386, %v470
    %v472 = vpop.f32.mrf.mxu0
    %v473 = vpop.f32.mrf.mxu0
    %v474 = vadd.f32 %v386, %v473
    %v475 = vpop.f32.mrf.mxu0
    %476 = vdwg.mxu0
    %477 = vst [vmem:[%s7] sm:$0xff] %v471
    %478 = vst [vmem:[%s7 + $0x8] sm:$0xff] %v474
    // Predicated region
    $region38: #{mlp_forward.1} parent=1 // pred_check
      _
    $region39: #{mlp_forward.1} parent=1 // pred_check_branch
      %480 = sbr.rel (0) target = $region41
    $region40: #{mlp_forward.1} parent=1 // pred_region
      _
    $region41: #{mlp_forward.1} parent=1 // pred_fallthru
      _
    // Predicated region
    $region42: #{mlp_forward.1} parent=1 // pred_check
      _
    $region43: #{mlp_forward.1} parent=1 // pred_check_branch
      %482 = sbr.rel (0) target = $region45
    $region44: #{mlp_forward.1} parent=1 // pred_region
      _
    $region45: #{mlp_forward.1} parent=1 // pred_fallthru
      _
    %483 = vsyncpa [#allocation3], 1
    %484 = vsyncpa [#allocation5], 1

</llo_original>
